<compile_context>
chip_gen: v6e
topology: v6e:2x2x1
jax: 0.10.0
libtpu: 0.0.40
codegen_flags: <defaults>
</compile_context>

<pallas_src>
import functools

import numpy as np
import jax
import jax.numpy as jnp
from jax.experimental import pallas as pl
from jax.experimental.pallas import tpu as pltpu

FILT_SIZE = 4
STRIDE = 2


def _cdiv(a, b):
    return -(-a // b)


def _pad_to(n, m):
    return _cdiv(n, m) * m


# ---------------------------------------------------------------------------
# Constant banded upsample matrices (pad + filter + crops folded in).
# ---------------------------------------------------------------------------
def _upsample_matrix(n):
    """(2n, n) matrix M so that M @ v is the 1D antialiased 2x upsample of v
    (filt_size=4, stride=2) with replication padding and the module's output
    crops already applied.

    With xp = replication-pad(v) (so xp[r] = v[clamp(r-1)]):
      out[2m]   = .25*xp[m]   + .75*xp[m+1]
      out[2m+1] = .75*xp[m+1] + .25*xp[m+2]
    """
    a = np.array([1.0, 3.0, 3.0, 1.0])
    w = a * STRIDE / a.sum()                  # [0.25, 0.75, 0.75, 0.25]
    e0, e1 = w[3], w[1]                       # even outputs
    o0, o1 = w[2], w[0]                       # odd outputs
    clamp = lambda t: min(max(t, 0), n - 1)   # replication pad == index clamp
    M = np.zeros((2 * n, n), dtype=np.float64)
    for m in range(n):
        M[2 * m, clamp(m - 1)] += e0
        M[2 * m, clamp(m)] += e1
        M[2 * m + 1, clamp(m)] += o0
        M[2 * m + 1, clamp(m + 1)] += o1
    return M


# ---------------------------------------------------------------------------
# Planner: block size / grid / scoped-VMEM limit from the actual working set.
# ---------------------------------------------------------------------------
def _vmem_capacity_bytes():
    """Physical VMEM per TensorCore, with a conservative (v7x) fallback."""
    try:
        info = pltpu.get_tpu_info()
        cap = getattr(info, "vmem_capacity_bytes", None)
        if cap:
            return int(cap)
    except Exception:
        pass
    return 64 * 1024 * 1024


def _tensorcores_per_chip():
    """Best-effort detection of chips with 2 TensorCores sharing the parallel
    grid axis (v7x); used only to bias the grid length to be even."""
    try:
        kind = jax.devices()[0].device_kind.lower()
    except Exception:
        return 1
    return 2 if "7" in kind else 1


def _plane_block_bytes(h, w, itemsize):
    """Tile-padded VMEM bytes of one input plane + one output plane."""
    xin = _pad_to(h, 8) * _pad_to(w, 128) * itemsize
    xout = _pad_to(2 * h, 8) * _pad_to(2 * w, 128) * itemsize
    return xin + xout


def _const_block_bytes(h, w):
    """Tile-padded bytes of the bf16 A (2H,H) and B^T (W,2W) constants."""
    a = _pad_to(2 * h, 8) * _pad_to(h, 128) * 2
    bt = _pad_to(w, 8) * _pad_to(2 * w, 128) * 2
    return a + bt


def _plan(num_planes, h, w, itemsize):
    """Pick planes-per-step (tb), grid length, and a scoped-VMEM limit."""
    cap = _vmem_capacity_bytes()
    per_plane = _plane_block_bytes(h, w, itemsize)     # in + out plane, padded
    const = 2 * _const_block_bytes(h, w)               # A + B^T, double-buffered
    temps = 32 * h * w                                 # per-plane in-kernel temporaries
    margin = (4 << 20) + temps                         # + compiler scratch

    if const + 2 * per_plane + margin > int(0.9 * cap):
        # TODO(synk): tile over H with a 2-row halo (and single-buffer the
        # constants via pl.Buffered(1)) so very large planes fit v7x's 64 MiB.
        raise NotImplementedError(
            f"Upsample plane {h}x{w} working set does not fit VMEM "
            f"({cap} bytes); H-halo tiling not implemented.")

    # HBM-bound: fill VMEM with large double-buffered blocks.  ~cap/6 per step
    # -> ~21 MiB on v5e/v6e (128 MiB VMEM), ~10 MiB on v7x (64 MiB VMEM).
    per_step_target = min(24 << 20, max(8 << 20, cap // 6))
    tb = max(1, min(num_planes, per_step_target // per_plane))
    # Never let the full working set exceed ~90% of VMEM.
    tb = min(tb, max(1, (int(0.9 * cap) - const - margin) // (2 * per_plane)))

    steps = _cdiv(num_planes, tb)
    tb = _cdiv(num_planes, steps)          # balance: avoid a tiny ragged last block

    # v7x: two TensorCores split the "parallel" grid axis -> prefer an even
    # (>= 2) step count.  Single-TC chips (v5e/v6e) keep grid == 1 when the
    # whole batch fits a single block (lowest per-step overhead).
    if _tensorcores_per_chip() >= 2 and num_planes >= 2 and steps % 2 == 1:
        steps += 1
        tb = _cdiv(num_planes, steps)
    steps = _cdiv(num_planes, tb)

    work = const + 2 * tb * per_plane + margin
    vmem_limit = min(max(work, 32 << 20), int(0.92 * cap))
    vmem_limit = max(vmem_limit, work)     # never set the limit below the need
    return tb, steps, int(vmem_limit)


# ---------------------------------------------------------------------------
# Kernel
# ---------------------------------------------------------------------------
def _upsample_kernel(a_ref, bt_ref, x_ref, o_ref, *, tb, total_planes):
    # a_ref : (2H, H)   bf16 row-upsample matrix (same block every step)
    # bt_ref: (W, 2W)   bf16 col-upsample matrix (same block every step)
    # x_ref : (tb, H, W)     input planes for this grid step
    # o_ref : (tb, 2H, 2W)   fused, already-interleaved output planes
    a = a_ref[...]
    bt = bt_ref[...]

    if total_planes % tb == 0:
        n_valid = tb                                   # static trip count
    else:
        # Ragged last block: only compute the in-bounds planes (the OOB tail
        # of the output block is dropped by the pipeline writeback anyway).
        n_valid = jnp.minimum(tb, total_planes - pl.program_id(0) * tb)

    def body(i, carry):
        # Column upsample first so the intermediate's lane dim is 2W
        # (lane-dense for W >= 64); then row upsample + polyphase interleave.
        x = x_ref[i].astype(jnp.bfloat16)                                   # (H, W)
        t = jnp.dot(x, bt, preferred_element_type=jnp.float32)             # (H, 2W)
        o = jnp.dot(a, t.astype(jnp.bfloat16),
                    preferred_element_type=jnp.float32)                    # (2H, 2W)
        o_ref[i] = o.astype(o_ref.dtype)
        return carry

    jax.lax.fori_loop(0, n_valid, body, 0)


# ---------------------------------------------------------------------------
# Wrapper
# ---------------------------------------------------------------------------
def upsample(x):
    """Equivalent of Upsample(channels=C, pad_type='repl', filt_size=4,
    stride=2)(x):  (N, C, H, W) -> (N, C, 2H, 2W).  Output dtype follows the
    input dtype (feed bf16 to halve HBM traffic of this bandwidth-bound op)."""
    N, C, H, W = x.shape
    B = N * C
    xb = x.reshape(B, H, W)

    # Filter taps (0.25 / 0.75 / 1.0 at the clamped edges) are exact in bf16.
    A = jnp.asarray(_upsample_matrix(H), jnp.bfloat16)                           # (2H, H)
    Bt = jnp.asarray(np.ascontiguousarray(_upsample_matrix(W).T), jnp.bfloat16)  # (W, 2W)

    tb, steps, vmem_limit = _plan(B, H, W, jnp.dtype(x.dtype).itemsize)

    # TODO(synk): for W < 64 (deepest decoder stages) fold several planes into
    # the lane dimension so the output stores stay lane-dense (>= 128 lanes).
    out = pl.pallas_call(
        functools.partial(_upsample_kernel, tb=tb, total_planes=B),
        out_shape=jax.ShapeDtypeStruct((B, 2 * H, 2 * W), x.dtype),
        grid=(steps,),
        in_specs=[
            pl.BlockSpec((2 * H, H), lambda b: (0, 0)),      # A: resident constant
            pl.BlockSpec((W, 2 * W), lambda b: (0, 0)),      # B^T: resident constant
            pl.BlockSpec((tb, H, W), lambda b: (b, 0, 0)),   # tb input planes
        ],
        out_specs=pl.BlockSpec((tb, 2 * H, 2 * W), lambda b: (b, 0, 0)),
        compiler_params=pltpu.CompilerParams(
            dimension_semantics=("parallel",),
            vmem_limit_bytes=vmem_limit,
        ),
    )(A, Bt, xb)

    return out.reshape(N, C, 2 * H, 2 * W)


# ---------------------------------------------------------------------------
# Reference + self-test
# ---------------------------------------------------------------------------
def _reference_numpy(x):
    """Brute-force scatter reference of the PyTorch forward pass."""
    x = np.asarray(x, dtype=np.float64)
    N, C, H, W = x.shape
    s, k = STRIDE, FILT_SIZE
    a = np.array([1.0, 3.0, 3.0, 1.0])
    filt = a[:, None] * a[None, :]
    filt = filt / filt.sum() * s ** 2
    xp = np.pad(x, ((0, 0), (0, 0), (1, 1), (1, 1)), mode="edge")
    Hp, Wp = H + 2, W + 2
    full = np.zeros((N, C, (Hp - 1) * s + k, (Wp - 1) * s + k), dtype=np.float64)
    for i in range(Hp):
        for j in range(Wp):
            full[:, :, i * s:i * s + k, j * s:j * s + k] += (
                xp[:, :, i:i + 1, j:j + 1] * filt
            )
    p = 1 + (k - 1) // 2  # padding = 1 + pad_size = 2
    conv = full[:, :, p:full.shape[2] - p, p:full.shape[3] - p]
    ret = conv[:, :, 1:, 1:]        # [:, :, 1:, 1:]
    return ret[:, :, :-1, :-1]      # filt_size even -> drop last row/col


if __name__ == "__main__":
    key = jax.random.PRNGKey(0)
    N, C, H, W = 2, 4, 16, 16
    x = jax.random.normal(key, (N, C, H, W), dtype=jnp.float32)

    y = jax.block_until_ready(upsample(x))
    assert y.shape == (N, C, 2 * H, 2 * W), y.shape

    ref = _reference_numpy(np.asarray(x))
    # Intentional tolerance: the MXU path uses bf16 operands (the filter taps
    # are exact in bf16; activations/intermediates are truncated) with f32
    # accumulation, keeping this HBM-bound op at the bandwidth roofline on all
    # generations.  Worst-case deviation is a few 1e-3 of the activation scale.
    np.testing.assert_allclose(np.asarray(y), ref, rtol=2e-2, atol=2e-2)
    print("KERNEL_OK")
</pallas_src>

<mosaic_0001>
module attributes {stable_mosaic.version = 11 : i64} {
  func.func @_upsample_kernel(%arg0: i32, %arg1: memref<32x16xbf16, #tpu.memory_space<vmem>>, %arg2: memref<16x32xbf16, #tpu.memory_space<vmem>>, %arg3: memref<8x16x16xf32, #tpu.memory_space<vmem>>, %arg4: memref<8x32x32xf32, #tpu.memory_space<vmem>>) attributes {dimension_semantics = [#tpu.dimension_semantics<parallel>], iteration_bounds = array<i64: 1>, scalar_prefetch = 0 : i64, scratch_operands = 0 : i64, tpu.core_type = #tpu.core_type<tc>, window_params = [{pipeline_mode = #tpu.pipeline_mode<synchronous>, transform_indices = @transform_0, window_bounds = array<i64: 32, 16>}, {pipeline_mode = #tpu.pipeline_mode<synchronous>, transform_indices = @transform_1, window_bounds = array<i64: 16, 32>}, {transform_indices = @transform_2, window_bounds = array<i64: 8, 16, 16>}, {transform_indices = @transform_3, window_bounds = array<i64: 8, 32, 32>}]} {
    %c0 = arith.constant 0 : index
    %c0_0 = arith.constant 0 : index
    %0 = vector.load %arg1[%c0, %c0_0] : memref<32x16xbf16, #tpu.memory_space<vmem>>, vector<32x16xbf16>
    %c0_1 = arith.constant 0 : index
    %c0_2 = arith.constant 0 : index
    %1 = vector.load %arg2[%c0_1, %c0_2] : memref<16x32xbf16, #tpu.memory_space<vmem>>, vector<16x32xbf16>
    %c0_i32 = arith.constant 0 : i32
    %c8_i32 = arith.constant 8 : i32
    %2 = arith.addi %c0_i32, %c8_i32 : i32
    %c1_i32 = arith.constant 1 : i32
    scf.for %arg5 = %c0_i32 to %2 step %c1_i32  : i32 {
      %3 = arith.index_cast %arg5 : i32 to index
      %c0_4 = arith.constant 0 : index
      %c0_5 = arith.constant 0 : index
      %4 = vector.load %arg3[%3, %c0_4, %c0_5] : memref<8x16x16xf32, #tpu.memory_space<vmem>>, vector<1x16x16xf32>
      %5 = vector.shape_cast %4 : vector<1x16x16xf32> to vector<16x16xf32>
      %6 = arith.truncf %5 : vector<16x16xf32> to vector<16x16xbf16>
      %cst = arith.constant dense<0.000000e+00> : vector<16x32xf32>
      %7 = tpu.matmul %6, %1, %cst {dimension_numbers = #tpu.dot_dimension_numbers<[1], [0], [0], [1], [0, 0, 1, 1], [], []>} : vector<16x16xbf16>, vector<16x32xbf16>, vector<16x32xf32> -> vector<16x32xf32>
      %8 = arith.truncf %7 : vector<16x32xf32> to vector<16x32xbf16>
      %cst_6 = arith.constant dense<0.000000e+00> : vector<32x32xf32>
      %9 = tpu.matmul %0, %8, %cst_6 {dimension_numbers = #tpu.dot_dimension_numbers<[1], [0], [0], [1], [0, 0, 1, 1], [], []>} : vector<32x16xbf16>, vector<16x32xbf16>, vector<32x32xf32> -> vector<32x32xf32>
      %10 = arith.index_cast %arg5 : i32 to index
      %c0_7 = arith.constant 0 : index
      %c0_8 = arith.constant 0 : index
      %11 = vector.load %arg4[%10, %c0_7, %c0_8] : memref<8x32x32xf32, #tpu.memory_space<vmem>>, vector<1x32x32xf32>
      %12 = vector.shape_cast %11 : vector<1x32x32xf32> to vector<32x32xf32>
      %13 = vector.shape_cast %9 : vector<32x32xf32> to vector<1x32x32xf32>
      tpu.vector_store %arg4[%10, %c0_7, %c0_8], %13 {strides = array<i32>} : memref<8x32x32xf32, #tpu.memory_space<vmem>>, vector<1x32x32xf32>,
    }
    %c8_i32_3 = arith.constant 8 : i32
    return
  }
  func.func @transform_0(%arg0: i32) -> (i32, i32) {
    %c0_i32 = arith.constant 0 : i32
    %c0_i32_0 = arith.constant 0 : i32
    %c0_i32_1 = arith.constant 0 : i32
    return %c0_i32, %c0_i32_0 : i32, i32
  }
  func.func @transform_1(%arg0: i32) -> (i32, i32) {
    %c0_i32 = arith.constant 0 : i32
    %c0_i32_0 = arith.constant 0 : i32
    %c0_i32_1 = arith.constant 0 : i32
    return %c0_i32, %c0_i32_0 : i32, i32
  }
  func.func @transform_2(%arg0: i32) -> (i32, i32, i32) {
    %c0_i32 = arith.constant 0 : i32
    %c0_i32_0 = arith.constant 0 : i32
    %c0_i32_1 = arith.constant 0 : i32
    return %arg0, %c0_i32, %c0_i32_0 : i32, i32, i32
  }
  func.func @transform_3(%arg0: i32) -> (i32, i32, i32) {
    %c0_i32 = arith.constant 0 : i32
    %c0_i32_0 = arith.constant 0 : i32
    %c0_i32_1 = arith.constant 0 : i32
    return %arg0, %c0_i32, %c0_i32_0 : i32, i32, i32
  }
}

</mosaic_0001>

<llo_original>
// kernel: tpu_custom_call.1
$region0: #{tpu_custom_call.1}
  #allocation0 [shape = 'u32[]', space=smem, size = 0x4, offset = 0x4, fixed_abs, tag = 'smem constant byte address 0x4 - core index']
  #allocation1 [shape = 'u32[144,128]{1,0:T(1,128)}', space=vmem, size = 0x12000, scoped, tag = 'internal scratch']
  %s0 = inlined_call_operand.vmem [shape: bf16[32,16], index: 0, kind: input, shape index: {}]
  %s1 = inlined_call_operand.vmem [shape: bf16[16,32], index: 1, kind: input, shape index: {}]
  %s2 = inlined_call_operand.hbm [shape: f32[8,16,16], index: 2, kind: input, shape index: {}]
  %s3 = inlined_call_operand.hbm [shape: f32[8,32,32], index: 3, kind: output, shape index: {}]
  %s4 = sld [smem:[#allocation0]]
  $region33: #{tpu_custom_call.1} parent=0
    _
  %s6 = ssub.s32 1, %s4
  %s7 = scalar_select 0, %s6, %s4
  $region1: #{tpu_custom_call.1} parent=0
    #allocation2 [shape = 'u8[65536]{0}', space=vmem, size = 0x10000, scoped, tag = 'input window, operand 2, single buffered']
    #allocation3 [shape = 's32[1]{0}', space=sflag, size = 0x4, scoped, tag = 'scoped memory for tpu_custom_call.1']
    #allocation4 [shape = 's32[1]{0}', space=sflag, size = 0x4, scoped, tag = 'scoped memory for tpu_custom_call.1']
    #allocation5 [shape = 'u8[131072]{0}', space=vmem, size = 0x20000, scoped, tag = 'output window, operand 0, single buffered']
    %8 = vsyncpa [#allocation3], 0
    %9 = vsyncpa [#allocation4], 0
    // Predicated region
    $region2: #{tpu_custom_call.1} parent=1 // pred_check
      _
    $region3: #{tpu_custom_call.1} parent=1 // pred_check_branch
      %11 = sbr.rel (0) target = $region5
    $region4: #{tpu_custom_call.1} parent=1 // pred_region
      _
    $region5: #{tpu_custom_call.1} parent=1 // pred_fallthru
      _
    // Predicated region
    $region6: #{tpu_custom_call.1} parent=1 // pred_check
      _
    $region7: #{tpu_custom_call.1} parent=1 // pred_check_branch
      %13 = sbr.rel (0) target = $region9
    $region8: #{tpu_custom_call.1} parent=1 // pred_region
      _
    $region9: #{tpu_custom_call.1} parent=1 // pred_fallthru
      _
    // Predicated region
    $region10: #{tpu_custom_call.1} parent=1 // pred_check
      _
    $region11: #{tpu_custom_call.1} parent=1 // pred_check_branch
      %15 = sbr.rel (0) target = $region13
    $region12: #{tpu_custom_call.1} parent=1 // pred_region
      %s17 = ssub.s32 2048, 2048
      %18 = vsyncadd [#allocation3], %s17
      %s19 = sshll.u32 [#allocation2], 4
      %s20 = int_to_ptr.vmem [resolvable:$true] %s19
      %25 = dma.hbm_to_vmem [thread:$0]  %s2, 2048, %s20, [#allocation3], 128, 128, 8
    $region13: #{tpu_custom_call.1} parent=1 // pred_fallthru
      _
    // Predicated region
    $region14: #{tpu_custom_call.1} parent=1 // pred_check
      _
    $region15: #{tpu_custom_call.1} parent=1 // pred_check_branch
      %27 = sbr.rel (0) target = $region17
    $region16: #{tpu_custom_call.1} parent=1 // pred_region
      %28 = dma.done [#allocation3], 2048
    $region17: #{tpu_custom_call.1} parent=1 // pred_fallthru
      _
    %v30 = vld [vmem:[%s0] sm:$0xf]
    %v31 = vld [vmem:[%s0 + $0x4] sm:$0xf]
    %v32 = vld [vmem:[%s0 + $0x8] sm:$0xf]
    %v33 = vld [vmem:[%s0 + $0xc] sm:$0xf]
    %v34 = vld [vmem:[%s1] sm:$0xf]
    %v35 = vld [vmem:[%s1 + $0x4] sm:$0xf]
    loop: start=0, step=1, limit=8
    $region18: #{tpu_custom_call.1} parent=1 // loop_pre_header
      _
    $region19: #{tpu_custom_call.1} parent=1 // loop_header
      %s37 = sphi 0, %s41
      %p38 = scmp.ge.s32.totalorder %s37, 8
    $region20: #{tpu_custom_call.1} parent=1 // loop_header_branch
      %40 = sbr.rel (%p38) target = $region24
    $region21: #{tpu_custom_call.1} parent=1 // loop_body
      %s42 = smul.u32 %s37, 16
      %s43 = scalar_lea.vmem [#allocation2], %s42
      %v44 = vld [vmem:[%s43] sm:$0xff]
      %v45 = vld [vmem:[%s43 + $0x8] sm:$0xff]
      %v46 = vpack.c.bf16 %v45, %v44
      %v49 = vunpack.c.l.b16 %v34
      %v50 = vunpack.c.l.b16 %v35
      %v51 = vpack.c.b16 %v50, %v49
      %vm53 = vcmask 130048
      %v55 = vsel %vm53, %v46, 0
      %57 = vmatprep.subr.bf16.mxu0 0
      %58 = vmatpush1.bf16.msra.mxu0 0
      %59 = vmatprep.subr.bf16.mxu0 0
      %60 = vmatpush1.bf16.msra.mxu0 0
      %61 = vmatprep.subr.bf16.mxu0 0
      %62 = vmatpush1.bf16.msra.mxu0 0
      %63 = vmatprep.subr.bf16.mxu0 0
      %64 = vmatpush1.bf16.msra.mxu0 0
      %65 = vmatprep.subr.bf16.mxu0 0
      %66 = vmatpush1.bf16.msra.mxu0 0
      %67 = vmatprep.subr.bf16.mxu0 0
      %68 = vmatpush1.bf16.msra.mxu0 0
      %69 = vmatprep.subr.bf16.mxu0 0
      %70 = vmatpush1.bf16.msra.mxu0 0
      %71 = vmatprep.subr.bf16.mxu0 0
      %72 = vmatpush1.bf16.msra.mxu0 %v51
      %73 = vmatprep.subr.bf16.mxu0 0
      %74 = vmatpush2.bf16.msra.mxu0 0
      %75 = vmatprep.subr.bf16.mxu0 0
      %76 = vmatpush2.bf16.msra.mxu0 0
      %77 = vmatprep.subr.bf16.mxu0 0
      %78 = vmatpush2.bf16.msra.mxu0 0
      %79 = vmatprep.subr.bf16.mxu0 0
      %80 = vmatpush2.bf16.msra.mxu0 0
      %81 = vmatprep.subr.bf16.mxu0 0
      %82 = vmatpush2.bf16.msra.mxu0 0
      %83 = vmatprep.subr.bf16.mxu0 0
      %84 = vmatpush2.bf16.msra.mxu0 0
      %85 = vmatprep.subr.bf16.mxu0 0
      %86 = vmatpush2.bf16.msra.mxu0 0
      %87 = vmatprep.subr.bf16.mxu0 0
      %88 = vmatpush2.bf16.msra.mxu0 0
      %89 = vmatprep.mubr.bf16.mxu0 0
      %90 = vmatmul.mubr.bf16.gmra.mxu0 %v55
      %v91 = vpop.f32.mrf.mxu0
      %v92 = vadd.f32 0.0, %v91
      %v93 = vpop.f32.mrf.mxu0
      %v94 = vpop.f32.mrf.mxu0
      %v95 = vadd.f32 0.0, %v94
      %v96 = vpop.f32.mrf.mxu0
      %97 = vdwg.mxu0
      %v98 = vpack.c.bf16 %v95, %v92
      %v103 = vunpack.c.l.b16 %v30
      %v104 = vunpack.c.l.b16 %v31
      %v105 = vunpack.c.l.b16 %v32
      %v106 = vunpack.c.l.b16 %v33
      %v107 = vpack.c.b16 %v104, %v103
      %v108 = vpack.c.b16 %v106, %v105
      %v110 = vsel %vm53, %v107, 0
      %v113 = vsel %vm53, %v108, 0
      %115 = vmatprep.subr.bf16.mxu0 0
      %116 = vmatpush1.bf16.msra.mxu0 0
      %117 = vmatprep.subr.bf16.mxu0 0
      %118 = vmatpush1.bf16.msra.mxu0 0
      %119 = vmatprep.subr.bf16.mxu0 0
      %120 = vmatpush1.bf16.msra.mxu0 0
      %121 = vmatprep.subr.bf16.mxu0 0
      %122 = vmatpush1.bf16.msra.mxu0 0
      %123 = vmatprep.subr.bf16.mxu0 0
      %124 = vmatpush1.bf16.msra.mxu0 0
      %125 = vmatprep.subr.bf16.mxu0 0
      %126 = vmatpush1.bf16.msra.mxu0 0
      %127 = vmatprep.subr.bf16.mxu0 0
      %128 = vmatpush1.bf16.msra.mxu0 0
      %129 = vmatprep.subr.bf16.mxu0 0
      %130 = vmatpush1.bf16.msra.mxu0 %v98
      %131 = vmatprep.subr.bf16.mxu0 0
      %132 = vmatpush2.bf16.msra.mxu0 0
      %133 = vmatprep.subr.bf16.mxu0 0
      %134 = vmatpush2.bf16.msra.mxu0 0
      %135 = vmatprep.subr.bf16.mxu0 0
      %136 = vmatpush2.bf16.msra.mxu0 0
      %137 = vmatprep.subr.bf16.mxu0 0
      %138 = vmatpush2.bf16.msra.mxu0 0
      %139 = vmatprep.subr.bf16.mxu0 0
      %140 = vmatpush2.bf16.msra.mxu0 0
      %141 = vmatprep.subr.bf16.mxu0 0
      %142 = vmatpush2.bf16.msra.mxu0 0
      %143 = vmatprep.subr.bf16.mxu0 0
      %144 = vmatpush2.bf16.msra.mxu0 0
      %145 = vmatprep.subr.bf16.mxu0 0
      %146 = vmatpush2.bf16.msra.mxu0 0
      %147 = vmatprep.mubr.bf16.mxu0 0
      %148 = vmatmul.mubr.bf16.gmra.mxu0 %v110
      %v149 = vpop.f32.mrf.mxu0
      %v150 = vadd.f32 0.0, %v149
      %v151 = vpop.f32.mrf.mxu0
      %v152 = vpop.f32.mrf.mxu0
      %v153 = vadd.f32 0.0, %v152
      %v154 = vpop.f32.mrf.mxu0
      %155 = vmatprep.mubr.bf16.mxu0 0
      %156 = vmatmul.mubr.bf16.gmra.mxu0 %v113
      %v157 = vpop.f32.mrf.mxu0
      %v158 = vadd.f32 0.0, %v157
      %v159 = vpop.f32.mrf.mxu0
      %v160 = vpop.f32.mrf.mxu0
      %v161 = vadd.f32 0.0, %v160
      %v162 = vpop.f32.mrf.mxu0
      %163 = vdwg.mxu0
      %s164 = smul.u32 %s37, 32
      %s165 = scalar_lea.vmem [#allocation5], %s164
      %vm166 = vcmask 261120
      %167 = vst.msk [vmem:[%s165] sm:$0xff] %vm166, %v150
      %168 = vst.msk [vmem:[%s165 + $0x8] sm:$0xff] %vm166, %v153
      %169 = vst.msk [vmem:[%s165 + $0x10] sm:$0xff] %vm166, %v158
      %170 = vst.msk [vmem:[%s165 + $0x18] sm:$0xff] %vm166, %v161
    $region22: #{tpu_custom_call.1} parent=1 // loop_footer
      %s41 = sadd.s32 1, %s37
    $region23: #{tpu_custom_call.1} parent=1 // loop_footer_branch
      %36 = sbr.rel target = $region19
    $region24: #{tpu_custom_call.1} parent=1 // loop_exit
      _
    // Predicated region
    $region25: #{tpu_custom_call.1} parent=1 // pred_check
      _
    $region26: #{tpu_custom_call.1} parent=1 // pred_check_branch
      %172 = sbr.rel (0) target = $region28
    $region27: #{tpu_custom_call.1} parent=1 // pred_region
      %s174 = ssub.s32 4096, 4096
      %175 = vsyncadd [#allocation4], %s174
      %s176 = sshll.u32 [#allocation5], 4
      %s177 = int_to_ptr.vmem [resolvable:$true] %s176
      %182 = dma.vmem_to_hbm [thread:$0]  %s177, 4096, %s3, [#allocation4], 128, 128, 8
    $region28: #{tpu_custom_call.1} parent=1 // pred_fallthru
      _
    // Predicated region
    $region29: #{tpu_custom_call.1} parent=1 // pred_check
      _
    $region30: #{tpu_custom_call.1} parent=1 // pred_check_branch
      %184 = sbr.rel (0) target = $region32
    $region31: #{tpu_custom_call.1} parent=1 // pred_region
      %185 = dma.done [#allocation4], 4096
    $region32: #{tpu_custom_call.1} parent=1 // pred_fallthru
      _
    %186 = vsyncpa [#allocation3], 1
    %187 = vsyncpa [#allocation4], 1

</llo_original>
